<compile_context>
chip_gen: v7x
topology: tpu7x:2x2x1
jax: 0.10.0
libtpu: 0.0.40
codegen_flags: <defaults>
</compile_context>

<pallas_src>
import functools

import numpy as np
import jax
import jax.numpy as jnp
from jax import lax
from jax.experimental import pallas as pl
from jax.experimental.pallas import tpu as pltpu


def _round_up(x: int, m: int) -> int:
    return (x + m - 1) // m * m


def _cdiv(a: int, b: int) -> int:
    return -(-a // b)


_NUM_CORES = 2          # v7x has 2 TensorCores; extra grid step is harmless on v5e/v6e
_VMEM_BUDGET = 24 << 20  # conservative per-step working-set budget (fits v5e/v6e/v7x)


# ----------------------------------------------------------------------------
# Pallas kernel
# ----------------------------------------------------------------------------
def _make_kernel(c1: int, c2: int, c1p: int, c2p: int, sp: int,
                 n_valid: int, tn: int, k_steps: int):
    """Fused CE(target)+CE(aspect)+matched-MSE, returning RAW sums per core/layer."""
    r1 = c1p
    r2 = c1p + c2p
    r3 = r2 + sp
    r4 = r3 + sp

    def _ce(head_bf16, c_real, c_pad, lbl, valid):
        # head: (c_pad, TN) bf16, classes on sublanes, N on lanes.
        xf = head_bf16.astype(jnp.float32)
        cls = lax.broadcasted_iota(jnp.int32, (c_pad, tn), 0)
        xm = jnp.where(cls < c_real, xf, -1e30)            # mask padded classes
        m = jnp.max(xm, axis=0, keepdims=True)             # (1, TN)
        lse = jnp.log(jnp.sum(jnp.exp(xm - m), axis=0, keepdims=True)) + m
        # Gather-free pick of the target-class logit (iota == label select).
        pick = jnp.sum(jnp.where(cls == lbl, xf, 0.0), axis=0, keepdims=True)
        return jnp.where(valid, lse - pick, 0.0)

    def kernel(slab_ref, ints_ref, out_ref, acc_t, acc_a, acc_s):
        c = pl.program_id(0)          # core split (parallel)
        k = pl.program_id(2)          # N-tile reduction step (arbitrary)

        @pl.when(k == 0)
        def _init():
            acc_t[...] = jnp.zeros_like(acc_t)
            acc_a[...] = jnp.zeros_like(acc_a)
            acc_s[...] = jnp.zeros_like(acc_s)

        # Validity of the global columns handled by this tile (tail masking).
        col = lax.broadcasted_iota(jnp.int32, (1, tn), 1) + (c * k_steps + k) * tn
        valid = col < n_valid

        lbl_t = ints_ref[0, 0:1, :]                        # (1, TN) int32
        lbl_a = ints_ref[0, 1:2, :]
        mm = (ints_ref[0, 2:3, :] > 0).astype(jnp.float32)  # match mask (0 on pad)

        # Two classification heads (sublane class reductions, lane-dense N).
        acc_t[...] += _ce(slab_ref[0, 0:r1, :], c1, c1p, lbl_t, valid)
        acc_a[...] += _ce(slab_ref[0, r1:r2, :], c2, c2p, lbl_a, valid)

        # Matched-sentiment MSE in the same pass (padded rows/cols contribute 0).
        ps = slab_ref[0, r2:r3, :].astype(jnp.float32)
        ts = slab_ref[0, r3:r4, :].astype(jnp.float32)
        d = ps - ts
        acc_s[...] += jnp.sum(d * d, axis=0, keepdims=True) * mm

        @pl.when(k == pl.num_programs(2) - 1)
        def _finalize():
            # Pack the three raw sums into one lane-dense (8,128) block:
            # sublane 0 -> CE(target) sum, 1 -> CE(aspect) sum, 2 -> MSE sum.
            sub = lax.broadcasted_iota(jnp.int32, (8, 128), 0)
            st = jnp.broadcast_to(jnp.sum(acc_t[...], axis=1, keepdims=True), (8, 128))
            sa = jnp.broadcast_to(jnp.sum(acc_a[...], axis=1, keepdims=True), (8, 128))
            ss = jnp.broadcast_to(jnp.sum(acc_s[...], axis=1, keepdims=True), (8, 128))
            out_ref[0, 0] = jnp.where(sub == 0, st,
                                      jnp.where(sub == 1, sa,
                                                jnp.where(sub == 2, ss, 0.0)))

    return kernel


# ----------------------------------------------------------------------------
# Jitted wrapper: relayout (fused by XLA) + single pallas_call + normalisation
# ----------------------------------------------------------------------------
@functools.partial(jax.jit, static_argnames=("tile_n",))
def _criterion_losses_pallas(pred_target, pred_aspect, pred_sentiment,
                             tgt_class, tgt_aspect, tgt_sent_dense, match,
                             *, tile_n: int = 32768):
    """All arrays carry a leading layer axis L (main + aux decoder layers).
    Returns (loss_target, loss_aspect, loss_sentiment), each shape (L,) f32."""
    L, B, Q, C1 = pred_target.shape
    C2 = pred_aspect.shape[-1]
    S = pred_sentiment.shape[-1]
    N = B * Q

    C1p, C2p, Sp = _round_up(C1, 8), _round_up(C2, 8), _round_up(S, 8)
    R = C1p + C2p + 2 * Sp                      # rows of the bf16 slab

    # --- Tile size: as large as the VMEM budget allows, split over 2 cores ---
    hmax = max(C1p, C2p, Sp, 8)
    bytes_per_col = (2 * (R * 2 + 8 * 4)        # double-buffered bf16 + int32 streams
                     + 3 * 4                    # f32 accumulators
                     + 10 * hmax * 4)           # generous f32 intermediates headroom
    tn_cap = max(128, (_VMEM_BUDGET // bytes_per_col) // 128 * 128)
    half = max(1, _cdiv(N, _NUM_CORES))         # columns per core
    TN0 = _round_up(min(half, int(tile_n), tn_cap), 128)
    K = _cdiv(half, TN0)                        # inner reduction steps per core
    TN = _round_up(_cdiv(half, K), 128)         # shrink tile to reduce padding waste
    N_pad = _NUM_CORES * K * TN

    dma_dtype = jnp.bfloat16   # halve HBM->VMEM bytes; math is f32 in-kernel

    def lane_dense(x, c, c_pad):
        # [L, B, Q, c] -> [L, c_pad, N_pad]; N on lanes, classes on sublanes.
        # TODO(synk): ideally the producing layer emits [C, B*Q] directly so
        # this transpose/pad disappears; here it is one fused XLA relayout.
        xt = jnp.swapaxes(x.reshape(L, N, c), 1, 2).astype(dma_dtype)
        return jnp.pad(xt, ((0, 0), (0, c_pad - c), (0, N_pad - N)))

    # Single bf16 slab: [target logits | aspect logits | pred sent | tgt sent].
    slab = jnp.concatenate([
        lane_dense(pred_target, C1, C1p),
        lane_dense(pred_aspect, C2, C2p),
        lane_dense(pred_sentiment, S, Sp),
        lane_dense(tgt_sent_dense, S, Sp),
    ], axis=1)                                                   # (L, R, N_pad)

    match_f = match.reshape(L, N).astype(jnp.float32)
    ints = jnp.stack([tgt_class.reshape(L, N).astype(jnp.int32),
                      tgt_aspect.reshape(L, N).astype(jnp.int32),
                      (match_f > 0).astype(jnp.int32)], axis=1)  # (L, 3, N)
    ints = jnp.pad(ints, ((0, 0), (0, 8 - 3), (0, N_pad - N)))   # (L, 8, N_pad)

    kernel = _make_kernel(C1, C2, C1p, C2p, Sp, N, TN, K)

    vmem_limit = int(min(48 << 20, max(16 << 20, bytes_per_col * TN + (2 << 20))))

    out = pl.pallas_call(
        kernel,
        out_shape=jax.ShapeDtypeStruct((_NUM_CORES, L, 8, 128), jnp.float32),
        grid_spec=pltpu.PrefetchScalarGridSpec(
            num_scalar_prefetch=0,
            grid=(_NUM_CORES, L, K),
            in_specs=[
                pl.BlockSpec((1, R, TN), lambda c, l, k: (l, 0, c * K + k)),
                pl.BlockSpec((1, 8, TN), lambda c, l, k: (l, 0, c * K + k)),
            ],
            out_specs=pl.BlockSpec((1, 1, 8, 128), lambda c, l, k: (c, l, 0, 0)),
            scratch_shapes=[pltpu.VMEM((1, TN), jnp.float32),
                            pltpu.VMEM((1, TN), jnp.float32),
                            pltpu.VMEM((1, TN), jnp.float32)],
        ),
        compiler_params=pltpu.CompilerParams(
            dimension_semantics=("parallel", "arbitrary", "arbitrary"),
            vmem_limit_bytes=vmem_limit,
        ),
    )(slab, ints)

    per_layer = jnp.sum(out, axis=0)            # sum the two per-core partials
    sum_t = per_layer[:, 0, 0]                  # (L,)
    sum_a = per_layer[:, 1, 0]
    sum_s = per_layer[:, 2, 0]

    m_count = jnp.sum(match_f, axis=1)          # matched targets per layer (device)
    inv_n = 1.0 / float(N)                      # CE mean over B*Q rows
    loss_t = sum_t * inv_n
    loss_a = sum_a * inv_n
    loss_s = sum_s / jnp.maximum(m_count * float(S), 1.0)
    return loss_t, loss_a, loss_s


# ----------------------------------------------------------------------------
# Host-side glue (matcher stand-in + label / sentiment scatter)
# ----------------------------------------------------------------------------
def simple_matcher(outputs, targets):
    """Deterministic stand-in for the Hungarian matcher (external module in the
    PyTorch reference): target j of batch b is matched to query (2*j + b) % Q."""
    # TODO(synk): the real scipy-based Hungarian matcher has no Pallas equivalent.
    Q = outputs["pred_target"].shape[1]
    indices = []
    for b, t in enumerate(targets):
        T = int(np.asarray(t["target"]).shape[0])
        src = (2 * np.arange(T) + b) % Q
        tgt = np.arange(T)
        indices.append((src.astype(np.int64), tgt.astype(np.int64)))
    return indices


def _build_dense_targets(targets, indices, B, Q, num_targets, num_aspects, S):
    """Scatter matched labels / sentiments into dense [B,Q] / [B,Q,S] arrays.
    Unmatched queries get the 'no-object' class (num_targets / num_aspects)."""
    tgt_class = np.full((B, Q), num_targets, np.int32)
    tgt_aspect = np.full((B, Q), num_aspects, np.int32)
    match = np.zeros((B, Q), np.float32)
    sent = np.zeros((B, Q, S), np.float32)
    for b, (src, tgt) in enumerate(indices):
        src = np.asarray(src)
        tgt = np.asarray(tgt)
        tgt_class[b, src] = np.asarray(targets[b]["target"])[tgt]
        tgt_aspect[b, src] = np.asarray(targets[b]["aspect"])[tgt]
        sent[b, src] = np.asarray(targets[b]["sentiment"])[tgt]
        match[b, src] = 1.0
    return tgt_class, tgt_aspect, match, sent


class SetCriterion:
    """JAX/Pallas port of the DETR-style SetCriterion forward pass.
    Main + all aux decoder layers are evaluated with ONE fused pallas_call."""

    _NAME_MAP = {"target": "loss_target",
                 "aspect": "loss_aspect",
                 "sentiment": "loss_sentiment"}

    def __init__(self, num_targets, num_aspects, matcher, weight_dict,
                 eos_coef1, eos_coef2, losses, tile_n=32768):
        self.num_targets = num_targets
        self.num_aspects = num_aspects
        self.matcher = matcher
        self.weight_dict = weight_dict
        self.eos_coef1 = eos_coef1
        self.eos_coef2 = eos_coef2
        self.losses = list(losses)
        self.tile_n = tile_n
        # Buffers kept for parity with the PyTorch module; its forward never
        # applies them (F.cross_entropy is called without `weight=`).
        empty_weight1 = np.ones(num_targets + 1, np.float32)
        empty_weight2 = np.ones(num_aspects + 1, np.float32)
        empty_weight1[-1] = eos_coef2
        empty_weight2[-1] = eos_coef1
        self.empty_weight1 = jnp.asarray(empty_weight1)
        self.empty_weight2 = jnp.asarray(empty_weight2)

    def forward(self, outputs, targets):
        outputs_without_aux = {k: v for k, v in outputs.items()
                               if k != "aux_outputs"}
        layers = [outputs_without_aux] + list(outputs.get("aux_outputs", []))
        indices = [self.matcher(lyr, targets) for lyr in layers]

        B, Q, _ = np.shape(layers[0]["pred_target"])
        S = np.shape(layers[0]["pred_sentiment"])[-1]

        dense = [_build_dense_targets(targets, idx, B, Q,
                                      self.num_targets, self.num_aspects, S)
                 for idx in indices]
        tgt_class = np.stack([d[0] for d in dense])
        tgt_aspect = np.stack([d[1] for d in dense])
        match = np.stack([d[2] for d in dense])
        sent_dense = np.stack([d[3] for d in dense])

        pred_t = jnp.stack([jnp.asarray(l["pred_target"]) for l in layers])
        pred_a = jnp.stack([jnp.asarray(l["pred_aspect"]) for l in layers])
        pred_s = jnp.stack([jnp.asarray(l["pred_sentiment"]) for l in layers])

        loss_t, loss_a, loss_s = _criterion_losses_pallas(
            pred_t, pred_a, pred_s,
            jnp.asarray(tgt_class), jnp.asarray(tgt_aspect),
            jnp.asarray(sent_dense), jnp.asarray(match),
            tile_n=self.tile_n)

        per_layer = [{"loss_target": loss_t[i],
                      "loss_aspect": loss_a[i],
                      "loss_sentiment": loss_s[i]} for i in range(len(layers))]
        losses = {}
        for name in self.losses:
            key = self._NAME_MAP[name]
            losses[key] = per_layer[0][key]
        for i in range(1, len(layers)):
            for name in self.losses:
                key = self._NAME_MAP[name]
                losses[key + f"_{i - 1}"] = per_layer[i][key]
        return losses

    __call__ = forward


# ----------------------------------------------------------------------------
# Pure-JAX reference (same bf16 rounding of DMA'd tensors as the kernel)
# ----------------------------------------------------------------------------
def reference_losses(pred_target, pred_aspect, pred_sentiment,
                     tgt_class, tgt_aspect, match, sent_dense):
    def _bf16(x):
        return jnp.asarray(x, jnp.float32).astype(jnp.bfloat16).astype(jnp.float32)

    def _ce(logits, labels):
        x = _bf16(logits).reshape(-1, logits.shape[-1])
        l = jnp.asarray(labels, jnp.int32).reshape(-1)
        m = jnp.max(x, axis=-1, keepdims=True)
        lse = jnp.log(jnp.sum(jnp.exp(x - m), axis=-1, keepdims=True)) + m
        pick = jnp.take_along_axis(x, l[:, None], axis=-1)
        return jnp.mean(lse - pick)

    lt = _ce(pred_target, tgt_class)
    la = _ce(pred_aspect, tgt_aspect)
    S = pred_sentiment.shape[-1]
    M = float(np.sum(np.asarray(match)))
    d = _bf16(pred_sentiment) - _bf16(sent_dense)
    ls = jnp.sum(d * d * jnp.asarray(match, jnp.float32)[..., None]) / max(M * S, 1.0)
    return lt, la, ls


# ----------------------------------------------------------------------------
# Demo
# ----------------------------------------------------------------------------
if __name__ == "__main__":
    B, Q, S = 2, 8, 3
    num_targets, num_aspects = 6, 4
    C1, C2 = num_targets + 1, num_aspects + 1

    key = jax.random.PRNGKey(0)
    k1, k2, k3, k4, k5, k6 = jax.random.split(key, 6)
    outputs = {
        "pred_target": jax.random.normal(k1, (B, Q, C1), jnp.float32),
        "pred_aspect": jax.random.normal(k2, (B, Q, C2), jnp.float32),
        "pred_sentiment": jax.random.normal(k3, (B, Q, S), jnp.float32),
        "aux_outputs": [{
            "pred_target": jax.random.normal(k4, (B, Q, C1), jnp.float32),
            "pred_aspect": jax.random.normal(k5, (B, Q, C2), jnp.float32),
            "pred_sentiment": jax.random.normal(k6, (B, Q, S), jnp.float32),
        }],
    }

    rng = np.random.default_rng(0)
    n_per_batch = [3, 2]
    targets = []
    for t in n_per_batch:
        targets.append({
            "target": rng.integers(0, num_targets, size=(t,)).astype(np.int64),
            "aspect": rng.integers(0, num_aspects, size=(t,)).astype(np.int64),
            "sentiment": rng.standard_normal((t, S)).astype(np.float32),
        })

    criterion = SetCriterion(
        num_targets, num_aspects, simple_matcher,
        weight_dict={"loss_target": 1.0, "loss_aspect": 1.0,
                     "loss_sentiment": 1.0},
        eos_coef1=0.1, eos_coef2=0.1,
        losses=["target", "aspect", "sentiment"])

    losses = criterion.forward(outputs, targets)
    jax.block_until_ready(losses)

    # Correctness check: main layer and the one aux layer, against a pure-JAX
    # reference built from the same (matcher, scatter) glue and the same
    # bf16-rounded inputs.
    layer_dicts = [{k: v for k, v in outputs.items() if k != "aux_outputs"},
                   outputs["aux_outputs"][0]]
    for li, lyr in enumerate(layer_dicts):
        idx = simple_matcher(lyr, targets)
        tc, ta, mm, sd = _build_dense_targets(targets, idx, B, Q,
                                              num_targets, num_aspects, S)
        ref_t, ref_a, ref_s = reference_losses(
            lyr["pred_target"], lyr["pred_aspect"], lyr["pred_sentiment"],
            tc, ta, mm, sd)
        suffix = "" if li == 0 else f"_{li - 1}"
        np.testing.assert_allclose(np.asarray(losses["loss_target" + suffix]),
                                   np.asarray(ref_t), rtol=1e-3, atol=1e-3)
        np.testing.assert_allclose(np.asarray(losses["loss_aspect" + suffix]),
                                   np.asarray(ref_a), rtol=1e-3, atol=1e-3)
        np.testing.assert_allclose(np.asarray(losses["loss_sentiment" + suffix]),
                                   np.asarray(ref_s), rtol=1e-3, atol=1e-3)

    print("KERNEL_OK")
</pallas_src>

<mosaic_0001>
module attributes {stable_mosaic.version = 11 : i64} {
  func.func @kernel(%arg0: i32, %arg1: i32, %arg2: i32, %arg3: memref<1x32x128xbf16, #tpu.memory_space<vmem>>, %arg4: memref<1x8x128xi32, #tpu.memory_space<vmem>>, %arg5: memref<1x1x8x128xf32, #tpu.memory_space<vmem>>, %arg6: memref<1x128xf32, #tpu.memory_space<vmem>>, %arg7: memref<1x128xf32, #tpu.memory_space<vmem>>, %arg8: memref<1x128xf32, #tpu.memory_space<vmem>>) attributes {dimension_semantics = [#tpu.dimension_semantics<parallel>, #tpu.dimension_semantics<arbitrary>, #tpu.dimension_semantics<arbitrary>], iteration_bounds = array<i64: 2, 2, 1>, scalar_prefetch = 0 : i64, scratch_operands = 3 : i64, tpu.core_type = #tpu.core_type<tc>, window_params = [{transform_indices = @transform_0, window_bounds = array<i64: 1, 32, 128>}, {transform_indices = @transform_1, window_bounds = array<i64: 1, 8, 128>}, {transform_indices = @transform_2, window_bounds = array<i64: 1, 1, 8, 128>}]} {
    %c0_i32 = arith.constant 0 : i32
    %0 = arith.cmpi eq, %arg2, %c0_i32 : i32
    %1 = arith.extui %0 : i1 to i32
    %c0_i32_0 = arith.constant 0 : i32
    %2 = arith.cmpi ne, %1, %c0_i32_0 : i32
    scf.if %2 {
      %cst_43 = arith.constant 0.000000e+00 : f32
      %96 = vector.broadcast %cst_43 : f32 to vector<1x128xf32>
      %c0_44 = arith.constant 0 : index
      %c0_45 = arith.constant 0 : index
      %97 = vector.load %arg6[%c0_44, %c0_45] : memref<1x128xf32, #tpu.memory_space<vmem>>, vector<1x128xf32>
      tpu.vector_store %arg6[%c0_44, %c0_45], %96 {strides = array<i32>} : memref<1x128xf32, #tpu.memory_space<vmem>>, vector<1x128xf32>,
      %cst_46 = arith.constant 0.000000e+00 : f32
      %98 = vector.broadcast %cst_46 : f32 to vector<1x128xf32>
      %c0_47 = arith.constant 0 : index
      %c0_48 = arith.constant 0 : index
      %99 = vector.load %arg7[%c0_47, %c0_48] : memref<1x128xf32, #tpu.memory_space<vmem>>, vector<1x128xf32>
      tpu.vector_store %arg7[%c0_47, %c0_48], %98 {strides = array<i32>} : memref<1x128xf32, #tpu.memory_space<vmem>>, vector<1x128xf32>,
      %cst_49 = arith.constant 0.000000e+00 : f32
      %100 = vector.broadcast %cst_49 : f32 to vector<1x128xf32>
      %c0_50 = arith.constant 0 : index
      %c0_51 = arith.constant 0 : index
      %101 = vector.load %arg8[%c0_50, %c0_51] : memref<1x128xf32, #tpu.memory_space<vmem>>, vector<1x128xf32>
      tpu.vector_store %arg8[%c0_50, %c0_51], %100 {strides = array<i32>} : memref<1x128xf32, #tpu.memory_space<vmem>>, vector<1x128xf32>,
    } else {
    }
    %3 = tpu.iota {dimensions = array<i32: 1>} : vector<1x128xi32>
    %c1_i32 = arith.constant 1 : i32
    %4 = arith.muli %arg0, %c1_i32 : i32
    %5 = arith.addi %4, %arg2 : i32
    %c128_i32 = arith.constant 128 : i32
    %6 = arith.muli %5, %c128_i32 : i32
    %7 = vector.broadcast %6 : i32 to vector<1x128xi32>
    %8 = arith.addi %3, %7 : vector<1x128xi32>
    %c16_i32 = arith.constant 16 : i32
    %9 = vector.broadcast %c16_i32 : i32 to vector<1x128xi32>
    %10 = arith.cmpi slt, %8, %9 : vector<1x128xi32>
    %c0 = arith.constant 0 : index
    %c0_1 = arith.constant 0 : index
    %c0_2 = arith.constant 0 : index
    %11 = vector.load %arg4[%c0, %c0_1, %c0_2] : memref<1x8x128xi32, #tpu.memory_space<vmem>>, vector<1x1x128xi32>
    %12 = vector.shape_cast %11 : vector<1x1x128xi32> to vector<1x128xi32>
    %c0_3 = arith.constant 0 : index
    %c1 = arith.constant 1 : index
    %c0_4 = arith.constant 0 : index
    %13 = vector.load %arg4[%c0_3, %c1, %c0_4] : memref<1x8x128xi32, #tpu.memory_space<vmem>>, vector<1x1x128xi32>
    %14 = vector.shape_cast %13 : vector<1x1x128xi32> to vector<1x128xi32>
    %c0_5 = arith.constant 0 : index
    %c2 = arith.constant 2 : index
    %c0_6 = arith.constant 0 : index
    %15 = vector.load %arg4[%c0_5, %c2, %c0_6] : memref<1x8x128xi32, #tpu.memory_space<vmem>>, vector<1x1x128xi32>
    %16 = vector.shape_cast %15 : vector<1x1x128xi32> to vector<1x128xi32>
    %c0_i32_7 = arith.constant 0 : i32
    %17 = vector.broadcast %c0_i32_7 : i32 to vector<1x128xi32>
    %18 = arith.cmpi sgt, %16, %17 : vector<1x128xi32>
    %19 = arith.extui %18 : vector<1x128xi1> to vector<1x128xi32>
    %20 = arith.sitofp %19 : vector<1x128xi32> to vector<1x128xf32>
    %c0_8 = arith.constant 0 : index
    %c0_9 = arith.constant 0 : index
    %21 = vector.load %arg6[%c0_8, %c0_9] : memref<1x128xf32, #tpu.memory_space<vmem>>, vector<1x128xf32>
    %c0_10 = arith.constant 0 : index
    %c0_11 = arith.constant 0 : index
    %c0_12 = arith.constant 0 : index
    %22 = vector.load %arg3[%c0_10, %c0_11, %c0_12] : memref<1x32x128xbf16, #tpu.memory_space<vmem>>, vector<1x8x128xbf16>
    %23 = vector.shape_cast %22 : vector<1x8x128xbf16> to vector<8x128xbf16>
    %24 = arith.extf %23 : vector<8x128xbf16> to vector<8x128xf32>
    %25 = tpu.iota {dimensions = array<i32: 0>} : vector<8x128xi32>
    %c7_i32 = arith.constant 7 : i32
    %26 = vector.broadcast %c7_i32 : i32 to vector<8x128xi32>
    %27 = arith.cmpi slt, %25, %26 : vector<8x128xi32>
    %cst = arith.constant -1.000000e+30 : f32
    %28 = vector.broadcast %cst : f32 to vector<8x128xf32>
    %29 = arith.select %27, %24, %28 : vector<8x128xi1>, vector<8x128xf32>
    %cst_13 = arith.constant dense<0xFF800000> : vector<128xf32>
    %30 = vector.multi_reduction <maximumf>, %29, %cst_13 [0] : vector<8x128xf32> to vector<128xf32>
    %31 = vector.shape_cast %30 : vector<128xf32> to vector<1x128xf32>
    %32 = vector.broadcast %31 : vector<1x128xf32> to vector<8x128xf32>
    %33 = arith.subf %29, %32 : vector<8x128xf32>
    %34 = math.exp %33 : vector<8x128xf32>
    %cst_14 = arith.constant dense<0.000000e+00> : vector<128xf32>
    %35 = vector.multi_reduction <add>, %34, %cst_14 [0] : vector<8x128xf32> to vector<128xf32>
    %36 = vector.shape_cast %35 : vector<128xf32> to vector<1x128xf32>
    %37 = math.log %36 : vector<1x128xf32>
    %38 = arith.addf %37, %31 : vector<1x128xf32>
    %39 = vector.broadcast %12 : vector<1x128xi32> to vector<8x128xi32>
    %40 = arith.cmpi eq, %25, %39 : vector<8x128xi32>
    %cst_15 = arith.constant 0.000000e+00 : f32
    %41 = vector.broadcast %cst_15 : f32 to vector<8x128xf32>
    %42 = arith.select %40, %24, %41 : vector<8x128xi1>, vector<8x128xf32>
    %cst_16 = arith.constant dense<0.000000e+00> : vector<128xf32>
    %43 = vector.multi_reduction <add>, %42, %cst_16 [0] : vector<8x128xf32> to vector<128xf32>
    %44 = vector.shape_cast %43 : vector<128xf32> to vector<1x128xf32>
    %45 = arith.subf %38, %44 : vector<1x128xf32>
    %cst_17 = arith.constant 0.000000e+00 : f32
    %46 = vector.broadcast %cst_17 : f32 to vector<1x128xf32>
    %47 = arith.select %10, %45, %46 : vector<1x128xi1>, vector<1x128xf32>
    %48 = arith.addf %21, %47 : vector<1x128xf32>
    %c0_18 = arith.constant 0 : index
    %c0_19 = arith.constant 0 : index
    %49 = vector.load %arg6[%c0_18, %c0_19] : memref<1x128xf32, #tpu.memory_space<vmem>>, vector<1x128xf32>
    tpu.vector_store %arg6[%c0_18, %c0_19], %48 {strides = array<i32>} : memref<1x128xf32, #tpu.memory_space<vmem>>, vector<1x128xf32>,
    %c0_20 = arith.constant 0 : index
    %c0_21 = arith.constant 0 : index
    %50 = vector.load %arg7[%c0_20, %c0_21] : memref<1x128xf32, #tpu.memory_space<vmem>>, vector<1x128xf32>
    %c0_22 = arith.constant 0 : index
    %c8 = arith.constant 8 : index
    %c0_23 = arith.constant 0 : index
    %51 = vector.load %arg3[%c0_22, %c8, %c0_23] : memref<1x32x128xbf16, #tpu.memory_space<vmem>>, vector<1x8x128xbf16>
    %52 = vector.shape_cast %51 : vector<1x8x128xbf16> to vector<8x128xbf16>
    %53 = arith.extf %52 : vector<8x128xbf16> to vector<8x128xf32>
    %54 = tpu.iota {dimensions = array<i32: 0>} : vector<8x128xi32>
    %c5_i32 = arith.constant 5 : i32
    %55 = vector.broadcast %c5_i32 : i32 to vector<8x128xi32>
    %56 = arith.cmpi slt, %54, %55 : vector<8x128xi32>
    %cst_24 = arith.constant -1.000000e+30 : f32
    %57 = vector.broadcast %cst_24 : f32 to vector<8x128xf32>
    %58 = arith.select %56, %53, %57 : vector<8x128xi1>, vector<8x128xf32>
    %cst_25 = arith.constant dense<0xFF800000> : vector<128xf32>
    %59 = vector.multi_reduction <maximumf>, %58, %cst_25 [0] : vector<8x128xf32> to vector<128xf32>
    %60 = vector.shape_cast %59 : vector<128xf32> to vector<1x128xf32>
    %61 = vector.broadcast %60 : vector<1x128xf32> to vector<8x128xf32>
    %62 = arith.subf %58, %61 : vector<8x128xf32>
    %63 = math.exp %62 : vector<8x128xf32>
    %cst_26 = arith.constant dense<0.000000e+00> : vector<128xf32>
    %64 = vector.multi_reduction <add>, %63, %cst_26 [0] : vector<8x128xf32> to vector<128xf32>
    %65 = vector.shape_cast %64 : vector<128xf32> to vector<1x128xf32>
    %66 = math.log %65 : vector<1x128xf32>
    %67 = arith.addf %66, %60 : vector<1x128xf32>
    %68 = vector.broadcast %14 : vector<1x128xi32> to vector<8x128xi32>
    %69 = arith.cmpi eq, %54, %68 : vector<8x128xi32>
    %cst_27 = arith.constant 0.000000e+00 : f32
    %70 = vector.broadcast %cst_27 : f32 to vector<8x128xf32>
    %71 = arith.select %69, %53, %70 : vector<8x128xi1>, vector<8x128xf32>
    %cst_28 = arith.constant dense<0.000000e+00> : vector<128xf32>
    %72 = vector.multi_reduction <add>, %71, %cst_28 [0] : vector<8x128xf32> to vector<128xf32>
    %73 = vector.shape_cast %72 : vector<128xf32> to vector<1x128xf32>
    %74 = arith.subf %67, %73 : vector<1x128xf32>
    %cst_29 = arith.constant 0.000000e+00 : f32
    %75 = vector.broadcast %cst_29 : f32 to vector<1x128xf32>
    %76 = arith.select %10, %74, %75 : vector<1x128xi1>, vector<1x128xf32>
    %77 = arith.addf %50, %76 : vector<1x128xf32>
    %c0_30 = arith.constant 0 : index
    %c0_31 = arith.constant 0 : index
    %78 = vector.load %arg7[%c0_30, %c0_31] : memref<1x128xf32, #tpu.memory_space<vmem>>, vector<1x128xf32>
    tpu.vector_store %arg7[%c0_30, %c0_31], %77 {strides = array<i32>} : memref<1x128xf32, #tpu.memory_space<vmem>>, vector<1x128xf32>,
    %c0_32 = arith.constant 0 : index
    %c16 = arith.constant 16 : index
    %c0_33 = arith.constant 0 : index
    %79 = vector.load %arg3[%c0_32, %c16, %c0_33] : memref<1x32x128xbf16, #tpu.memory_space<vmem>>, vector<1x8x128xbf16>
    %80 = vector.shape_cast %79 : vector<1x8x128xbf16> to vector<8x128xbf16>
    %81 = arith.extf %80 : vector<8x128xbf16> to vector<8x128xf32>
    %c0_34 = arith.constant 0 : index
    %c24 = arith.constant 24 : index
    %c0_35 = arith.constant 0 : index
    %82 = vector.load %arg3[%c0_34, %c24, %c0_35] : memref<1x32x128xbf16, #tpu.memory_space<vmem>>, vector<1x8x128xbf16>
    %83 = vector.shape_cast %82 : vector<1x8x128xbf16> to vector<8x128xbf16>
    %84 = arith.extf %83 : vector<8x128xbf16> to vector<8x128xf32>
    %85 = arith.subf %81, %84 : vector<8x128xf32>
    %c0_36 = arith.constant 0 : index
    %c0_37 = arith.constant 0 : index
    %86 = vector.load %arg8[%c0_36, %c0_37] : memref<1x128xf32, #tpu.memory_space<vmem>>, vector<1x128xf32>
    %87 = arith.mulf %85, %85 : vector<8x128xf32>
    %cst_38 = arith.constant dense<0.000000e+00> : vector<128xf32>
    %88 = vector.multi_reduction <add>, %87, %cst_38 [0] : vector<8x128xf32> to vector<128xf32>
    %89 = vector.shape_cast %88 : vector<128xf32> to vector<1x128xf32>
    %90 = arith.mulf %89, %20 : vector<1x128xf32>
    %91 = arith.addf %86, %90 : vector<1x128xf32>
    %c0_39 = arith.constant 0 : index
    %c0_40 = arith.constant 0 : index
    %92 = vector.load %arg8[%c0_39, %c0_40] : memref<1x128xf32, #tpu.memory_space<vmem>>, vector<1x128xf32>
    tpu.vector_store %arg8[%c0_39, %c0_40], %91 {strides = array<i32>} : memref<1x128xf32, #tpu.memory_space<vmem>>, vector<1x128xf32>,
    %c0_i32_41 = arith.constant 0 : i32
    %93 = arith.cmpi eq, %arg2, %c0_i32_41 : i32
    %94 = arith.extui %93 : i1 to i32
    %c0_i32_42 = arith.constant 0 : i32
    %95 = arith.cmpi ne, %94, %c0_i32_42 : i32
    scf.if %95 {
      %96 = tpu.iota {dimensions = array<i32: 0>} : vector<8x128xi32>
      %c0_43 = arith.constant 0 : index
      %c0_44 = arith.constant 0 : index
      %97 = vector.load %arg6[%c0_43, %c0_44] : memref<1x128xf32, #tpu.memory_space<vmem>>, vector<1x128xf32>
      %cst_45 = arith.constant dense<0.000000e+00> : vector<1xf32>
      %98 = vector.multi_reduction <add>, %97, %cst_45 [1] : vector<1x128xf32> to vector<1xf32>
      %99 = vector.shape_cast %98 : vector<1xf32> to vector<1x1xf32>
      %100 = vector.shape_cast %99 : vector<1x1xf32> to vector<1x1xf32>
      %101 = vector.broadcast %100 : vector<1x1xf32> to vector<8x128xf32>
      %c0_46 = arith.constant 0 : index
      %c0_47 = arith.constant 0 : index
      %102 = vector.load %arg7[%c0_46, %c0_47] : memref<1x128xf32, #tpu.memory_space<vmem>>, vector<1x128xf32>
      %cst_48 = arith.constant dense<0.000000e+00> : vector<1xf32>
      %103 = vector.multi_reduction <add>, %102, %cst_48 [1] : vector<1x128xf32> to vector<1xf32>
      %104 = vector.shape_cast %103 : vector<1xf32> to vector<1x1xf32>
      %105 = vector.shape_cast %104 : vector<1x1xf32> to vector<1x1xf32>
      %106 = vector.broadcast %105 : vector<1x1xf32> to vector<8x128xf32>
      %c0_49 = arith.constant 0 : index
      %c0_50 = arith.constant 0 : index
      %107 = vector.load %arg8[%c0_49, %c0_50] : memref<1x128xf32, #tpu.memory_space<vmem>>, vector<1x128xf32>
      %cst_51 = arith.constant dense<0.000000e+00> : vector<1xf32>
      %108 = vector.multi_reduction <add>, %107, %cst_51 [1] : vector<1x128xf32> to vector<1xf32>
      %109 = vector.shape_cast %108 : vector<1xf32> to vector<1x1xf32>
      %110 = vector.shape_cast %109 : vector<1x1xf32> to vector<1x1xf32>
      %111 = vector.broadcast %110 : vector<1x1xf32> to vector<8x128xf32>
      %c0_i32_52 = arith.constant 0 : i32
      %112 = vector.broadcast %c0_i32_52 : i32 to vector<8x128xi32>
      %113 = arith.cmpi eq, %96, %112 : vector<8x128xi32>
      %c1_i32_53 = arith.constant 1 : i32
      %114 = vector.broadcast %c1_i32_53 : i32 to vector<8x128xi32>
      %115 = arith.cmpi eq, %96, %114 : vector<8x128xi32>
      %c2_i32 = arith.constant 2 : i32
      %116 = vector.broadcast %c2_i32 : i32 to vector<8x128xi32>
      %117 = arith.cmpi eq, %96, %116 : vector<8x128xi32>
      %cst_54 = arith.constant 0.000000e+00 : f32
      %118 = vector.broadcast %cst_54 : f32 to vector<8x128xf32>
      %119 = arith.select %117, %111, %118 : vector<8x128xi1>, vector<8x128xf32>
      %120 = arith.select %115, %106, %119 : vector<8x128xi1>, vector<8x128xf32>
      %121 = arith.select %113, %101, %120 : vector<8x128xi1>, vector<8x128xf32>
      %c0_55 = arith.constant 0 : index
      %c0_56 = arith.constant 0 : index
      %c0_57 = arith.constant 0 : index
      %c0_58 = arith.constant 0 : index
      %122 = vector.load %arg5[%c0_55, %c0_56, %c0_57, %c0_58] : memref<1x1x8x128xf32, #tpu.memory_space<vmem>>, vector<1x1x8x128xf32>
      %123 = vector.shape_cast %122 : vector<1x1x8x128xf32> to vector<8x128xf32>
      %124 = vector.shape_cast %121 : vector<8x128xf32> to vector<1x1x8x128xf32>
      tpu.vector_store %arg5[%c0_55, %c0_56, %c0_57, %c0_58], %124 {strides = array<i32>} : memref<1x1x8x128xf32, #tpu.memory_space<vmem>>, vector<1x1x8x128xf32>,
    } else {
    }
    return
  }
  func.func @transform_0(%arg0: i32, %arg1: i32, %arg2: i32) -> (i32, i32, i32) {
    %c1_i32 = arith.constant 1 : i32
    %0 = arith.muli %arg0, %c1_i32 : i32
    %1 = arith.addi %0, %arg2 : i32
    %c0_i32 = arith.constant 0 : i32
    %c0_i32_0 = arith.constant 0 : i32
    return %arg1, %c0_i32, %1 : i32, i32, i32
  }
  func.func @transform_1(%arg0: i32, %arg1: i32, %arg2: i32) -> (i32, i32, i32) {
    %c1_i32 = arith.constant 1 : i32
    %0 = arith.muli %arg0, %c1_i32 : i32
    %1 = arith.addi %0, %arg2 : i32
    %c0_i32 = arith.constant 0 : i32
    %c0_i32_0 = arith.constant 0 : i32
    return %arg1, %c0_i32, %1 : i32, i32, i32
  }
  func.func @transform_2(%arg0: i32, %arg1: i32, %arg2: i32) -> (i32, i32, i32, i32) {
    %c0_i32 = arith.constant 0 : i32
    %c0_i32_0 = arith.constant 0 : i32
    %c0_i32_1 = arith.constant 0 : i32
    return %arg0, %arg1, %c0_i32, %c0_i32_0 : i32, i32, i32, i32
  }
}

</mosaic_0001>

<llo_original>
// kernel: _criterion_losses_pallas.1
$region0: #{_criterion_losses_pallas.1}
  #allocation0 [shape = 'u32[]', space=smem, size = 0x4, offset = 0x4, fixed_abs, tag = 'smem constant byte address 0x4 - core index']
  #allocation1 [shape = 'u32[144,128]{1,0:T(1,128)}', space=vmem, size = 0x12000, scoped, tag = 'internal scratch']
  #allocation2 [shape = 'f32[1,128]{1,0:T(1,128)}', space=vmem, size = 0x200, scoped, tag = 'scratch operand']
  #allocation3 [shape = 'f32[1,128]{1,0:T(1,128)}', space=vmem, size = 0x200, scoped, tag = 'scratch operand']
  #allocation4 [shape = 'f32[1,128]{1,0:T(1,128)}', space=vmem, size = 0x200, scoped, tag = 'scratch operand']
  %s0 = inlined_call_operand.vmem [shape: bf16[2,32,256], index: 0, kind: input, shape index: {}]
  %s1 = inlined_call_operand.vmem [shape: s32[2,8,256], index: 1, kind: input, shape index: {}]
  %s2 = inlined_call_operand.vmem [shape: f32[2,2,8,128], index: 2, kind: output, shape index: {}]
  %s3 = sld [smem:[#allocation0]]
  $region90: #{_criterion_losses_pallas.1} parent=0
    _
  %s5 = ssub.s32 1, %s3
  %s6 = scalar_select 0, %s5, %s3
  $region1: #{_criterion_losses_pallas.1} parent=0
    #allocation5 [shape = 'u8[16384]{0}', space=vmem, size = 0x4000, scoped, tag = 'input window, operand 0']
    loop: start=0, step=1, limit=6
    $region2: #{_criterion_losses_pallas.1} parent=1 // loop_pre_header
      _
    $region3: #{_criterion_losses_pallas.1} parent=1 // loop_header
      %s8 = sphi 0, %s12
      %p9 = scmp.ge.s32.totalorder %s8, 6
      %s15 = sphi 0, %s34
      %s16 = sphi 0, %s30
      %s17 = sphi 0, %s26
      %s18 = sphi 0, %s15
      %s19 = sphi 0, %s16
      %s20 = sphi 0, %s17
      %s21 = sphi 0, %s18
      %s22 = sphi 0, %s19
      %s23 = sphi 0, %s20
      %s41 = sphi 0, %s43
      %s44 = sphi 0, %s41
      %s45 = sphi 0, %s44
      %s61 = sphi 0, %s45
      %s71 = sphi 0, %s73
      %s74 = sphi 0, %s71
      %s75 = sphi 0, %s74
      %s91 = sphi 0, %s75
      %s99 = sphi 0, %s101
      %s102 = sphi 0, %s99
      %s103 = sphi 0, %s102
      %s119 = sphi 0, %s103
    $region4: #{_criterion_losses_pallas.1} parent=1 // loop_header_branch
      %11 = sbr.rel (%p9) target = $region8
    $region5: #{_criterion_losses_pallas.1} parent=1 // loop_body
      %s13 = ssub.s32 %s8, 1
      %s14 = ssub.s32 %s8, 2
      %s24 = sadd.s32 1, %s17
      %p25 = scmp.ge.s32.totalorder %s24, 1
      %s26 = scalar_select %p25, 0, %s24
      %s27 = sadd.s32 1, %s16
      %s28 = scalar_select %p25, %s27, %s16
      %p29 = scmp.ge.s32.totalorder %s28, 2
      %s30 = scalar_select %p29, 0, %s28
      %s31 = sadd.s32 1, %s15
      %s32 = scalar_select %p29, %s31, %s15
      %p33 = scmp.ge.s32.totalorder %s32, 2
      %s34 = scalar_select %p33, 0, %s32
      %s35 = sadd.s32 %s15, %s17
      %s36 = sadd.s32 %s34, %s26
      %s37 = ssub.s32 %s16, %s30
      %s38 = ssub.s32 %s35, %s36
      %s39 = sor.u32 %s37, %s38
      %p40 = scmp.eq.s32.totalorder %s39, 0
      %s42 = sadd.s32 %s41, 1
      %s43 = scalar_select %p40, %s41, %s42
      %p46 = pneg %p40
      %p47 = scmp.eq.s32.totalorder %s8, 3
      %p48 = por %p46, %p47
      %p49 = scmp.ne.s32.totalorder %s41, %s44
      %p50 = scmp.eq.s32.totalorder %s8, 0
      %p51 = por %p49, %p50
      %p52 = scmp.ne.s32.totalorder %s41, %s44
      %p53 = scmp.eq.s32.totalorder %s13, 3
      %p54 = por %p52, %p53
      %p55 = scmp.ne.s32.totalorder %s44, %s45
      %p56 = scmp.eq.s32.totalorder %s13, 0
      %p57 = por %p55, %p56
      %p58 = scmp.ne.s32.totalorder %s44, %s45
      %p59 = scmp.eq.s32.totalorder %s14, 3
      %p60 = por %p58, %p59
      %p62 = scmp.ne.s32.totalorder %s45, %s61
      %p63 = scmp.eq.s32.totalorder %s14, 0
      %p64 = por %p62, %p63
      %s65 = sadd.s32 %s15, %s17
      %s66 = sadd.s32 %s34, %s26
      %s67 = ssub.s32 %s16, %s30
      %s68 = ssub.s32 %s65, %s66
      %s69 = sor.u32 %s67, %s68
      %p70 = scmp.eq.s32.totalorder %s69, 0
      %s72 = sadd.s32 %s71, 1
      %s73 = scalar_select %p70, %s71, %s72
      %p76 = pneg %p70
      %p77 = scmp.eq.s32.totalorder %s8, 3
      %p78 = por %p76, %p77
      %p79 = scmp.ne.s32.totalorder %s71, %s74
      %p80 = scmp.eq.s32.totalorder %s8, 0
      %p81 = por %p79, %p80
      %p82 = scmp.ne.s32.totalorder %s71, %s74
      %p83 = scmp.eq.s32.totalorder %s13, 3
      %p84 = por %p82, %p83
      %p85 = scmp.ne.s32.totalorder %s74, %s75
      %p86 = scmp.eq.s32.totalorder %s13, 0
      %p87 = por %p85, %p86
      %p88 = scmp.ne.s32.totalorder %s74, %s75
      %p89 = scmp.eq.s32.totalorder %s14, 3
      %p90 = por %p88, %p89
      %p92 = scmp.ne.s32.totalorder %s75, %s91
      %p93 = scmp.eq.s32.totalorder %s14, 0
      %p94 = por %p92, %p93
      %s95 = ssub.s32 %s15, %s34
      %s96 = ssub.s32 %s16, %s30
      %s97 = sor.u32 %s95, %s96
      %p98 = scmp.eq.s32.totalorder %s97, 0
      %s100 = sadd.s32 %s99, 1
      %s101 = scalar_select %p98, %s99, %s100
      %p104 = pneg %p98
      %p105 = scmp.eq.s32.totalorder %s8, 3
      %p106 = por %p104, %p105
      %p107 = scmp.ne.s32.totalorder %s99, %s102
      %p108 = scmp.eq.s32.totalorder %s8, 0
      %p109 = por %p107, %p108
      %p110 = scmp.ne.s32.totalorder %s99, %s102
      %p111 = scmp.eq.s32.totalorder %s13, 3
      %p112 = por %p110, %p111
      %p113 = scmp.ne.s32.totalorder %s102, %s103
      %p114 = scmp.eq.s32.totalorder %s13, 0
      %p115 = por %p113, %p114
      %p116 = scmp.ne.s32.totalorder %s102, %s103
      %p117 = scmp.eq.s32.totalorder %s14, 3
      %p118 = por %p116, %p117
      %p120 = scmp.ne.s32.totalorder %s103, %s119
      %p121 = scmp.eq.s32.totalorder %s14, 0
      %p122 = por %p120, %p121
      %p123 = scmp.le.s32.totalorder 1, %s8
      %p124 = scmp.lt.s32.totalorder %s8, 5
      %p125 = pnand %p123, %p124
      %p126 = pneg %p125
      // Predicated region
      $region9: #{_criterion_losses_pallas.1} parent=5 // pred_check
        _
      $region10: #{_criterion_losses_pallas.1} parent=5 // pred_check_branch
        %128 = sbr.rel (%p125) target = $region12
      $region11: #{_criterion_losses_pallas.1} parent=5 // pred_region
        %s129 = ssub.s32 %s8, 1
      $region12: #{_criterion_losses_pallas.1} parent=5 // pred_fallthru
        _
      %p130 = scmp.lt.s32.totalorder %s8, 4
      // Predicated region
      $region13: #{_criterion_losses_pallas.1} parent=5 // pred_check
        %p131 = pneg %p130
      $region14: #{_criterion_losses_pallas.1} parent=5 // pred_check_branch
        %133 = sbr.rel (%p131) target = $region16
      $region15: #{_criterion_losses_pallas.1} parent=5 // pred_region
        // Predicated region
        $region17: #{_criterion_losses_pallas.1} parent=15 // pred_check
          %p134 = pneg %p51
        $region18: #{_criterion_losses_pallas.1} parent=15 // pred_check_branch
          %136 = sbr.rel (%p134) target = $region20
        $region19: #{_criterion_losses_pallas.1} parent=15 // pred_region
          %s137 = sand.u32 %s41, 1
          %s138 = sand.u32 %s41, 1
          %s139 = smul.addr %s138, 16
          %s140 = scalar_lea.vmem [#allocation5], %s139
          %s141 = sadd.s32 %s15, %s17
          %s142 = smul.addr %s16, 8
          %s143 = sadd.s32 %s141, %s142
          %s144 = smul.addr %s143, 4
          %s145 = scalar_lea.vmem %s0, %s144
          // Predicated region
          $region21: #{_criterion_losses_pallas.1} parent=19 // pred_check
            _
          $region22: #{_criterion_losses_pallas.1} parent=19 // pred_check_branch
            %147 = sbr.rel (0) target = $region24
          $region23: #{_criterion_losses_pallas.1} parent=19 // pred_region
            // Predicated region
            $region25: #{_criterion_losses_pallas.1} parent=23 // pred_check
              _
            $region26: #{_criterion_losses_pallas.1} parent=23 // pred_check_branch
              %149 = sbr.rel target = $region28
            $region27: #{_criterion_losses_pallas.1} parent=23 // pred_region
              // Predicated region
              $region40: #{_criterion_losses_pallas.1} parent=27 // pred_check
                _
              $region41: #{_criterion_losses_pallas.1} parent=27 // pred_check_branch
                %170 = sbr.rel (0) target = $region43
              $region42: #{_criterion_losses_pallas.1} parent=27 // pred_region
                loop: start=0, step=1, limit=1
                $region44: #{_criterion_losses_pallas.1} parent=42 // loop_pre_header
                  _
                $region45: #{_criterion_losses_pallas.1} parent=42 // loop_header
                  %s172 = sphi 0, %s176
                  %p173 = scmp.ge.s32.totalorder %s172, 1
                  %s177 = sphi %s145, %s145
                  %s178 = sphi %s140, %s140
                $region46: #{_criterion_losses_pallas.1} parent=42 // loop_header_branch
                  %175 = sbr.rel (%p173) target = $region50
                $region47: #{_criterion_losses_pallas.1} parent=42 // loop_body
                  _
                $region48: #{_criterion_losses_pallas.1} parent=42 // loop_footer
                  %s176 = sadd.s32 1, %s172
                $region49: #{_criterion_losses_pallas.1} parent=42 // loop_footer_branch
                  %171 = sbr.rel target = $region45
                $region50: #{_criterion_losses_pallas.1} parent=42 // loop_exit
                  _
                loop: start=0, step=1, limit=1
                $region51: #{_criterion_losses_pallas.1} parent=42 // loop_pre_header
                  _
                $region52: #{_criterion_losses_pallas.1} parent=42 // loop_header
                  %s181 = sphi 0, %s185
                  %p182 = scmp.ge.s32.totalorder %s181, 1
                  %s186 = sphi %s145, %s145
                  %s187 = sphi %s140, %s140
                $region53: #{_criterion_losses_pallas.1} parent=42 // loop_header_branch
                  %184 = sbr.rel (%p182) target = $region57
                $region54: #{_criterion_losses_pallas.1} parent=42 // loop_body
                  %v188 = vld [vmem:[%s186] sm:$0xf]
                  %189 = vst [vmem:[%s187] sm:$0xf] %v188
                  %v190 = vld [vmem:[%s186 + $0x8] sm:$0xf]
                  %191 = vst [vmem:[%s187 + $0x4] sm:$0xf] %v190
                  %v192 = vld [vmem:[%s186 + $0x10] sm:$0xf]
                  %193 = vst [vmem:[%s187 + $0x8] sm:$0xf] %v192
                  %v194 = vld [vmem:[%s186 + $0x18] sm:$0xf]
                  %195 = vst [vmem:[%s187 + $0xc] sm:$0xf] %v194
                $region55: #{_criterion_losses_pallas.1} parent=42 // loop_footer
                  %s185 = sadd.s32 1, %s181
                $region56: #{_criterion_losses_pallas.1} parent=42 // loop_footer_branch
                  %180 = sbr.rel target = $region52
                $region57: #{_criterion_losses_pallas.1} parent=42 // loop_exit
                  _
              $region43: #{_criterion_losses_pallas.1} parent=27 // pred_fallthru
                _
            $region28: #{_criterion_losses_pallas.1} parent=23 // pred_fallthru
              _
            // Predicated region
            $region29: #{_criterion_losses_pallas.1} parent=23 // pred_check
              _
            $region30: #{_criterion_losses_pallas.1} parent=23 // pred_check_branch
              %151 = sbr.rel (0) target = $region32
            $region31: #{_criterion_losses_pallas.1} parent=23 // pred_region
              loop: start=0, step=1, limit=1
              $region33: #{_criterion_losses_pallas.1} parent=31 // loop_pre_header
                _
              $region34: #{_criterion_losses_pallas.1} parent=31 // loop_header
                %s154 = sphi 0, %s158
                %p155 = scmp.ge.s32.totalorder %s154, 1
                %s159 = sphi %s145, %s145
                %s160 = sphi %s140, %s140
              $region35: #{_criterion_losses_pallas.1} parent=31 // loop_header_branch
                %157 = sbr.rel (%p155) target = $region39
              $region36: #{_criterion_losses_pallas.1} parent=31 // loop_body
                %v161 = vld [vmem:[%s159] sm:$0xf]
                %162 = vst [vmem:[%s160] sm:$0xf] %v161
                %v163 = vld [vmem:[%s159 + $0x8] sm:$0xf]
                %164 = vst [vmem:[%s160 + $0x4] sm:$0xf] %v163
                %v165 = vld [vmem:[%s159 + $0x10] sm:$0xf]
                %166 = vst [vmem:[%s160 + $0x8] sm:$0xf] %v165
                %v167 = vld [vmem:[%s159 + $0x18] sm:$0xf]
                %168 = vst [vmem:[%s160 + $0xc] sm:$0xf] %v167
              $region37: #{_criterion_losses_pallas.1} parent=31 // loop_footer
                %s158 = sadd.s32 1, %s154
              $region38: #{_criterion_losses_pallas.1} parent=31 // loop_footer_branch
                %153 = sbr.rel target = $region34
              $region39: #{_criterion_losses_pallas.1} parent=31 // loop_exit
                _
            $region32: #{_criterion_losses_pallas.1} parent=23 // pred_fallthru
              _
          $region24: #{_criterion_losses_pallas.1} parent=19 // pred_fallthru
            _
          %196 = vnop
        $region20: #{_criterion_losses_pallas.1} parent=15 // pred_fallthru
          _
        // Predicated region
        $region58: #{_criterion_losses_pallas.1} parent=15 // pred_check
          %p197 = pneg %p81
        $region59: #{_criterion_losses_pallas.1} parent=15 // pred_check_branch
          %199 = sbr.rel (%p197) target = $region61
        $region60: #{_criterion_losses_pallas.1} parent=15 // pred_region
          %s200 = sadd.s32 %s15, %s17
          %p201 = scmp.lt.s32.totalorder %s16, 1
          %s202 = scalar_select %p201, %s16, 1
          %p203 = scmp.lt.s32.totalorder %s200, 1
          %s204 = scalar_select %p203, %s200, 1
          %s205 = smul.addr %s202, 2
          %s206 = sadd.s32 %s204, %s205
          %s207 = smul.addr %s206, 8
          %s208 = scalar_lea.vmem %s1, %s207
          %s209 = sadd.s32 %s15, %s17
        $region61: #{_criterion_losses_pallas.1} parent=15 // pred_fallthru
          _
      $region16: #{_criterion_losses_pallas.1} parent=5 // pred_fallthru
        _
      %p210 = scmp.le.s32.totalorder 1, %s8
      %p211 = scmp.lt.s32.totalorder %s8, 5
      %p212 = pnand %p210, %p211
      %p213 = pneg %p212
      // Predicated region
      $region62: #{_criterion_losses_pallas.1} parent=5 // pred_check
        _
      $region63: #{_criterion_losses_pallas.1} parent=5 // pred_check_branch
        %215 = sbr.rel (%p212) target = $region65
      $region64: #{_criterion_losses_pallas.1} parent=5 // pred_region
        %s216 = ssub.s32 %s8, 1
        %s217 = sand.u32 %s44, 1
        %s218 = sand.u32 %s44, 1
        %s219 = smul.addr %s218, 16
        %s220 = scalar_lea.vmem [#allocation5], %s219
        // Predicated region
        $region66: #{_criterion_losses_pallas.1} parent=64 // pred_check
          %p221 = pneg %p57
        $region67: #{_criterion_losses_pallas.1} parent=64 // pred_check_branch
          %223 = sbr.rel (%p221) target = $region69
        $region68: #{_criterion_losses_pallas.1} parent=64 // pred_region
          _
        $region69: #{_criterion_losses_pallas.1} parent=64 // pred_fallthru
          _
        %s224 = sand.u32 %s44, 1
        %s225 = sand.u32 %s44, 1
        %s226 = smul.addr %s225, 16
        %s227 = scalar_lea.vmem [#allocation5], %s226
        %p228 = pneg %p57
        %p229 = pneg %p54
        %s230 = sadd.s32 %s18, %s20
        %p231 = scmp.lt.s32.totalorder %s19, 1
        %s232 = scalar_select %p231, %s19, 1
        %p233 = scmp.lt.s32.totalorder %s230, 1
        %s234 = scalar_select %p233, %s230, 1
        %s235 = smul.addr %s232, 2
        %s236 = sadd.s32 %s234, %s235
        %s237 = smul.addr %s236, 8
        %s238 = scalar_lea.vmem %s1, %s237
        %p239 = pneg %p87
        %p240 = pneg %p84
        %p241 = pneg %p115
        %p242 = pneg %p112
        %p243 = scmp.lt.s32.totalorder %s18, 1
        %s244 = scalar_select %p243, %s18, 1
        %p245 = scmp.lt.s32.totalorder %s19, 1
        %s246 = scalar_select %p245, %s19, 1
        %s247 = smul.addr %s244, 2
        %s248 = sadd.s32 %s246, %s247
        %s249 = smul.addr %s248, 8
        %s250 = scalar_lea.vmem %s2, %s249
        %s251 = sadd.s32 %s18, %s20
        %s252 = sadd.s32 %s18, %s20
        %p253 = scmp.lt.s32.totalorder %s19, 1
        %s254 = scalar_select %p253, %s19, 1
        %p255 = scmp.lt.s32.totalorder %s252, 1
        %s256 = scalar_select %p255, %s252, 1
        %s257 = smul.addr %s254, 2
        %s258 = sadd.s32 %s256, %s257
        %s259 = smul.addr %s258, 8
        %s260 = scalar_lea.vmem %s1, %s259
        %s261 = sadd.s32 %s18, %s20
        %p262 = scmp.lt.s32.totalorder %s18, 1
        %s263 = scalar_select %p262, %s18, 1
        %p264 = scmp.lt.s32.totalorder %s19, 1
        %s265 = scalar_select %p264, %s19, 1
        %s266 = smul.addr %s263, 2
        %s267 = sadd.s32 %s265, %s266
        %s268 = smul.addr %s267, 8
        %s269 = scalar_lea.vmem %s2, %s268
        %p270 = scmp.eq.s32.totalorder %s20, 0
        // Predicated region
        $region70: #{_criterion_losses_pallas.1} parent=64 // pred_check
          %p271 = pneg %p270
        $region71: #{_criterion_losses_pallas.1} parent=64 // pred_check_branch
          %273 = sbr.rel (%p271) target = $region73
        $region72: #{_criterion_losses_pallas.1} parent=64 // pred_region
          %274 = vst [vmem:[#allocation2] sm:$0x1] 0.0
          %275 = vst [vmem:[#allocation3] sm:$0x1] 0.0
          %276 = vst [vmem:[#allocation4] sm:$0x1] 0.0
        $region73: #{_criterion_losses_pallas.1} parent=64 // pred_fallthru
          _
        %v277 = vlaneseq
        %v278 = vand.u32 %v277, 127
        %s279 = sadd.s32 %s18, %s20
        %s280 = smul.u32 %s279, 128
        %v281 = vstv %s280
        %v282 = vadd.s32 %v278, %v281
        %vm283 = vcmp.lt.s32.totalorder %v282, 16
        %v284 = vld [vmem:[%s260] sm:$0x1]
        %v285 = vld [vmem:[%s260 + $0x1] sm:$0x1]
        %v286 = vld [vmem:[%s260 + $0x2] sm:$0x1]
        %vm287 = vcmp.gt.s32.totalorder %v286, 0
        %v288 = vsel %vm287, 1, 0
        %v289 = vcvt.s32.f32 %v288
        %v290 = vld [vmem:[#allocation2] sm:$0x1]
        %v291 = vld [vmem:[%s220] sm:$0xf]
        %v292 = vunpack.c.l.bf16 %v291
        %v293 = vlaneseq
        %v294 = vshrl.u32 %v293, 7
        %vm295 = vcmp.lt.s32.totalorder %v294, 7
        %v296 = vsel %vm295, %v292, -1e+30
        %v297 = vrot.slane %v296, 4
        %v298 = vmax.f32 %v296, %v297
        %v299 = vrot.slane %v298, 2
        %v300 = vmax.f32 %v298, %v299
        %v301 = vrot.slane %v300, 1
        %v302 = vmax.f32 %v300, %v301
        %v303 = vsub.f32 %v296, %v302
        %v304 = vmul.f32 %v303, 1.442695
        %v305 = vpow.pop %v304
        %v306 = vrot.slane %v305, 4
        %v307 = vadd.f32 %v305, %v306
        %v308 = vrot.slane %v307, 2
        %v309 = vadd.f32 %v307, %v308
        %v310 = vrot.slane %v309, 1
        %v311 = vadd.f32 %v309, %v310
        %v312 = vlog2.pop %v311
        %v313 = vmul.f32 %v312, 0.6931472
        %v314 = vadd.f32 %v313, %v302
        %v315 = vlaneseq
        %v316 = vshrl.u32 %v315, 7
        %v317 = vsub.s32 0, %v316
        %v318 = vrot.slane %v284, %v317
        %vm319 = vcmp.eq.s32.totalorder %v294, %v318
        %v320 = vsel %vm319, %v292, 0.0
        %v321 = vrot.slane %v320, 4
        %v322 = vadd.f32 %v320, %v321
        %v323 = vrot.slane %v322, 2
        %v324 = vadd.f32 %v322, %v323
        %v325 = vrot.slane %v324, 1
        %v326 = vadd.f32 %v324, %v325
        %v327 = vsub.f32 %v314, %v326
        %v328 = vsel %vm283, %v327, 0.0
        %v329 = vadd.f32 %v290, %v328
        %330 = vst [vmem:[#allocation2] sm:$0x1] %v329
        %v331 = vld [vmem:[#allocation3] sm:$0x1]
        %v332 = vld [vmem:[%s220 + $0x4] sm:$0xf]
        %v333 = vunpack.c.l.bf16 %v332
        %vm334 = vcmp.lt.s32.totalorder %v294, 5
        %v335 = vsel %vm334, %v333, -1e+30
        %v336 = vrot.slane %v335, 4
        %v337 = vmax.f32 %v335, %v336
        %v338 = vrot.slane %v337, 2
        %v339 = vmax.f32 %v337, %v338
        %v340 = vrot.slane %v339, 1
        %v341 = vmax.f32 %v339, %v340
        %v342 = vsub.f32 %v335, %v341
        %v343 = vmul.f32 %v342, 1.442695
        %v344 = vpow.pop %v343
        %v345 = vrot.slane %v344, 4
        %v346 = vadd.f32 %v344, %v345
        %v347 = vrot.slane %v346, 2
        %v348 = vadd.f32 %v346, %v347
        %v349 = vrot.slane %v348, 1
        %v350 = vadd.f32 %v348, %v349
        %v351 = vlog2.pop %v350
        %v352 = vmul.f32 %v351, 0.6931472
        %v353 = vadd.f32 %v352, %v341
        %v354 = vlaneseq
        %v355 = vshrl.u32 %v354, 7
        %v356 = vsub.s32 0, %v355
        %v357 = vrot.slane %v285, %v356
        %vm358 = vcmp.eq.s32.totalorder %v294, %v357
        %v359 = vsel %vm358, %v333, 0.0
        %v360 = vrot.slane %v359, 4
        %v361 = vadd.f32 %v359, %v360
        %v362 = vrot.slane %v361, 2
        %v363 = vadd.f32 %v361, %v362
        %v364 = vrot.slane %v363, 1
        %v365 = vadd.f32 %v363, %v364
        %v366 = vsub.f32 %v353, %v365
        %v367 = vsel %vm283, %v366, 0.0
        %v368 = vadd.f32 %v331, %v367
        %369 = vst [vmem:[#allocation3] sm:$0x1] %v368
        %v370 = vld [vmem:[%s220 + $0x8] sm:$0xf]
        %v371 = vunpack.c.l.bf16 %v370
        %v372 = vld [vmem:[%s220 + $0xc] sm:$0xf]
        %v373 = vunpack.c.l.bf16 %v372
        %v374 = vsub.f32 %v371, %v373
        %v375 = vld [vmem:[#allocation4] sm:$0x1]
        %v376 = vmul.f32 %v374, %v374
        %v377 = vrot.slane %v376, 4
        %v378 = vadd.f32 %v376, %v377
        %v379 = vrot.slane %v378, 2
        %v380 = vadd.f32 %v378, %v379
        %v381 = vrot.slane %v380, 1
        %v382 = vadd.f32 %v380, %v381
        %v383 = vmul.f32 %v382, %v289
        %v384 = vadd.f32 %v375, %v383
        %385 = vst [vmem:[#allocation4] sm:$0x1] %v384
        // Predicated region
        $region74: #{_criterion_losses_pallas.1} parent=64 // pred_check
          %p386 = pneg %p270
        $region75: #{_criterion_losses_pallas.1} parent=64 // pred_check_branch
          %388 = sbr.rel (%p386) target = $region77
        $region76: #{_criterion_losses_pallas.1} parent=64 // pred_region
          %v389 = vld [vmem:[#allocation2] sm:$0x1]
          %vm390 = vcmask 1040384
          %v391 = vsel %vm390, %v389, 0.0
          %392 = vadd.xlane.f32.xlu0 %v391
          %v393 = vpop.xlane.xlu0 %392
          %v394 = vlaneseq
          %v395 = vshrl.u32 %v394, 7
          %v396 = vsub.s32 0, %v395
          %v397 = vrot.slane %v393, %v396
          %v398 = vld [vmem:[#allocation3] sm:$0x1]
          %v399 = vsel %vm390, %v398, 0.0
          %400 = vadd.xlane.f32.xlu0 %v399
          %v401 = vpop.xlane.xlu0 %400
          %v402 = vlaneseq
          %v403 = vshrl.u32 %v402, 7
          %v404 = vsub.s32 0, %v403
          %v405 = vrot.slane %v401, %v404
          %v406 = vld [vmem:[#allocation4] sm:$0x1]
          %v407 = vsel %vm390, %v406, 0.0
          %408 = vadd.xlane.f32.xlu0 %v407
          %v409 = vpop.xlane.xlu0 %408
          %v410 = vlaneseq
          %v411 = vshrl.u32 %v410, 7
          %v412 = vsub.s32 0, %v411
          %v413 = vrot.slane %v409, %v412
          %vm414 = vcmp.eq.s32.totalorder %v294, 0
          %vm415 = vcmp.eq.s32.totalorder %v294, 1
          %vm416 = vcmp.eq.s32.totalorder %v294, 2
          %v417 = vsel %vm416, %v413, 0.0
          %v418 = vsel %vm415, %v405, %v417
          %v419 = vsel %vm414, %v397, %v418
          %420 = vst [vmem:[%s269] sm:$0xff] %v419
        $region77: #{_criterion_losses_pallas.1} parent=64 // pred_fallthru
          _
        %p421 = scmp.lt.s32.totalorder %s18, 1
        %s422 = scalar_select %p421, %s18, 1
        %p423 = scmp.lt.s32.totalorder %s19, 1
        %s424 = scalar_select %p423, %s19, 1
        %s425 = smul.addr %s422, 2
        %s426 = sadd.s32 %s424, %s425
        %s427 = smul.addr %s426, 8
        %s428 = scalar_lea.vmem %s2, %s427
        // Predicated region
        $region78: #{_criterion_losses_pallas.1} parent=64 // pred_check
          %p429 = pneg %p112
        $region79: #{_criterion_losses_pallas.1} parent=64 // pred_check_branch
          %431 = sbr.rel (%p429) target = $region81
        $region80: #{_criterion_losses_pallas.1} parent=64 // pred_region
          _
        $region81: #{_criterion_losses_pallas.1} parent=64 // pred_fallthru
          _
      $region65: #{_criterion_losses_pallas.1} parent=5 // pred_fallthru
        _
      %p432 = scmp.le.s32.totalorder 2, %s8
      // Predicated region
      $region82: #{_criterion_losses_pallas.1} parent=5 // pred_check
        %p433 = pneg %p432
      $region83: #{_criterion_losses_pallas.1} parent=5 // pred_check_branch
        %435 = sbr.rel (%p433) target = $region85
      $region84: #{_criterion_losses_pallas.1} parent=5 // pred_region
        %s436 = ssub.s32 %s8, 2
        // Predicated region
        $region86: #{_criterion_losses_pallas.1} parent=84 // pred_check
          %p437 = pneg %p118
        $region87: #{_criterion_losses_pallas.1} parent=84 // pred_check_branch
          %439 = sbr.rel (%p437) target = $region89
        $region88: #{_criterion_losses_pallas.1} parent=84 // pred_region
          %p440 = scmp.lt.s32.totalorder %s21, 1
          %s441 = scalar_select %p440, %s21, 1
          %p442 = scmp.lt.s32.totalorder %s22, 1
          %s443 = scalar_select %p442, %s22, 1
          %s444 = smul.addr %s441, 2
          %s445 = sadd.s32 %s443, %s444
          %s446 = smul.addr %s445, 8
          %s447 = scalar_lea.vmem %s2, %s446
        $region89: #{_criterion_losses_pallas.1} parent=84 // pred_fallthru
          _
      $region85: #{_criterion_losses_pallas.1} parent=5 // pred_fallthru
        _
    $region6: #{_criterion_losses_pallas.1} parent=1 // loop_footer
      %s12 = sadd.s32 1, %s8
    $region7: #{_criterion_losses_pallas.1} parent=1 // loop_footer_branch
      %7 = sbr.rel target = $region3
    $region8: #{_criterion_losses_pallas.1} parent=1 // loop_exit
      _

</llo_original>
